<compile_context>
chip_gen: v7x
topology: tpu7x:2x2x1
jax: 0.10.0
libtpu: 0.0.40
codegen_flags: <defaults>
</compile_context>

<pallas_src>
import functools

import jax
import jax.numpy as jnp
from jax.experimental import pallas as pl
from jax.experimental.pallas import tpu as pltpu

# ----------------------------- tiny synthetic T5 config -----------------------------
VOCAB = 1024         # base_model.config.vocab_size  -> T5Splade.output_dim
D_MODEL = 32
N_HEADS = 4
D_KV = 8             # inner dim = N_HEADS * D_KV = 32
D_FF = 64
N_ENC_LAYERS = 1
N_DEC_LAYERS = 1     # model_args.num_decoder_layers
REL_BUCKETS = 32
REL_MAX_DIST = 128
LN_EPS = 1e-6
NEG_INF = -1e9
VOCAB_TILE = 512             # lane-dense vocab tile; sweep 1024-2048 on v5e/v6e (128 MiB VMEM)
LOGITS_VMEM_BUDGET = 8 << 20  # cap on the per-group f32 logits tile inside the SPLADE kernel
INNER = N_HEADS * D_KV


def _round_up(x, m):
    return (x + m - 1) // m * m


# ----------------------------- Pallas kernels -----------------------------
def _mm_kernel(a_ref, b_ref, o_ref, acc_ref, *, activation):
    # tiled matmul with f32 VMEM accumulator; K is the innermost ("arbitrary") grid axis
    @pl.when(pl.program_id(2) == 0)
    def _():
        acc_ref[...] = jnp.zeros_like(acc_ref)

    acc_ref[...] += jnp.dot(a_ref[...], b_ref[...],
                            preferred_element_type=jnp.float32)

    @pl.when(pl.program_id(2) == pl.num_programs(2) - 1)
    def _():
        res = acc_ref[...]
        if activation is not None:          # e.g. relu fused into the FFN wi matmul
            res = activation(res)
        o_ref[...] = res.astype(o_ref.dtype)


def pallas_matmul(a, b, activation=None, *, out_dtype=jnp.float32,
                  tm=128, tn=256, tk=256):
    """(M, K) @ (K, N) -> (M, N). bf16 operands on the MXU, f32 VMEM accumulation.

    Dims that are not tile multiples are zero-padded (padded rows/cols are sliced off;
    zero K-padding is exact). Notes: on v5e sweep tn/tk down to 128 (4x128x128 MXU);
    on v7x keep N//tn >= 2 at real dims so both TensorCores get a parallel grid axis.
    """
    M, K = a.shape
    K2, N = b.shape
    assert K == K2
    tm = min(tm, _round_up(M, 8))
    tn = min(tn, _round_up(N, 128))
    tk = min(tk, _round_up(K, 128))
    Mp, Np, Kp = _round_up(M, tm), _round_up(N, tn), _round_up(K, tk)
    a = a.astype(jnp.bfloat16)
    b = b.astype(jnp.bfloat16)
    if (Mp, Kp) != (M, K):
        a = jnp.pad(a, ((0, Mp - M), (0, Kp - K)))
    if (Kp, Np) != (K, N):
        b = jnp.pad(b, ((0, Kp - K), (0, Np - N)))
    out = pl.pallas_call(
        functools.partial(_mm_kernel, activation=activation),
        out_shape=jax.ShapeDtypeStruct((Mp, Np), out_dtype),
        grid=(Mp // tm, Np // tn, Kp // tk),
        in_specs=[pl.BlockSpec((tm, tk), lambda i, j, k: (i, k)),
                  pl.BlockSpec((tk, tn), lambda i, j, k: (k, j))],
        out_specs=pl.BlockSpec((tm, tn), lambda i, j, k: (i, j)),
        scratch_shapes=[pltpu.VMEM((tm, tn), jnp.float32)],
        compiler_params=pltpu.CompilerParams(
            dimension_semantics=("parallel", "parallel", "arbitrary")),
    )(a, b)
    if (Mp, Np) != (M, N):
        out = out[:M, :N]
    return out


def _splade_kernel(h_ref, w_ref, o_ref, *, batch, seq, batch_chunk):
    # h_ref: (B*S, D) bf16  decoder hidden states, tie-scale AND pad-mask pre-folded
    # w_ref: (tv, D)  bf16  vocab-row tile of the shared embedding (no transpose in HBM)
    # o_ref: (B, tv)  f32   SPLADE reps for this vocab tile
    tv = w_ref.shape[0]
    w = w_ref[...]

    def group_reps(hg, nb):
        # Raw f32 logits; the per-batch max over seq is taken FIRST, then relu/log run once
        # per (batch, vocab):  max_s(log(1+relu(x_s))) == log(1+relu(max_s(x_s)))  since both
        # maps are monotone non-decreasing and send x<=0 to 0 (masked rows have logits 0).
        logits = jax.lax.dot_general(                 # (nb*S, D) contract (tv, D) on the MXU
            hg, w, dimension_numbers=(((1,), (1,)), ((), ())),
            preferred_element_type=jnp.float32)
        m = jnp.max(logits.reshape(nb, seq, tv), axis=1)   # 8-aligned sublane split -> view
        return jnp.log(1.0 + jnp.maximum(m, 0.0))          # applied to maxima only

    if batch_chunk == batch:
        # fast path: one matmul, one XLU reduce, one lane-dense full-tile store
        o_ref[...] = group_reps(h_ref[...], batch)
    else:
        # bound the (nb*S, tv) f32 logits intermediate (v7x 64 MiB VMEM) while h stays
        # resident and the weight tile is read once per grid step.
        rows = batch_chunk * seq

        @pl.loop(0, batch // batch_chunk)
        def _(g):
            r0 = pl.multiple_of(g * rows, rows)
            b0 = pl.multiple_of(g * batch_chunk, batch_chunk)
            o_ref[pl.ds(b0, batch_chunk), :] = group_reps(
                h_ref[pl.ds(r0, rows), :], batch_chunk)


def _pick_batch_chunk(batch, seq, tv):
    # largest divisor of `batch` whose f32 logits group tile fits the VMEM budget
    nb = batch
    while nb > 1 and nb * seq * tv * 4 > LOGITS_VMEM_BUDGET:
        nb -= 1
        while batch % nb:
            nb -= 1
    return nb


def splade_head(h, emb, attention_mask):
    """Fused tied LM-head + SPLADE pooling: max_s( log(1+relu(h @ emb.T)) * mask ).

    h:              (B, S, D)  decoder sequence output (unscaled)
    emb:            (V, D)     shared/tied embedding matrix (row-major, no transpose)
    attention_mask: (B, S)
    returns reps:   (B, V) float32
    """
    B, S, D = h.shape
    V = emb.shape[0]
    # Fold T5 tie_word_embeddings scaling and the padding mask into ONE elementwise pass
    # (masked rows -> logits 0 -> reps contribution 0, same as `* mask` before the max).
    scale = attention_mask.astype(jnp.float32)[:, :, None] * (D ** -0.5)
    h2 = (h * scale).astype(jnp.bfloat16).reshape(B * S, D)
    # Lane-dense vocab tiles; pad V with zero rows (act 0 -> never win the max, sliced off).
    tv = min(VOCAB_TILE, _round_up(V, 128))
    Vp = _round_up(V, tv)
    w = emb.astype(jnp.bfloat16)
    if Vp != V:
        w = jnp.pad(w, ((0, Vp - V), (0, 0)))
    nb = _pick_batch_chunk(B, S, tv)
    # Explicit scoped-VMEM limit sized from the actual tiles (floor 32 MiB, cap 64 MiB).
    vmem_limit = int(1.5 * (2 * h2.size * 2          # resident h (double-buffered by default)
                            + 2 * tv * D * 2         # streamed weight tile (x2 buffers)
                            + 2 * B * tv * 4         # output tile (x2 buffers)
                            + nb * S * tv * 4)) + (1 << 20)   # f32 logits of one batch group
    vmem_limit = min(max(vmem_limit, 32 << 20), 64 << 20)
    # TODO(synk): on v7x, pl.Buffered(1) on the resident h spec would drop one h-sized buffer.
    out = pl.pallas_call(
        functools.partial(_splade_kernel, batch=B, seq=S, batch_chunk=nb),
        out_shape=jax.ShapeDtypeStruct((B, Vp), jnp.float32),
        grid=(Vp // tv,),                                 # weight streamed from HBM exactly once
        in_specs=[
            pl.BlockSpec((B * S, D), lambda v: (0, 0)),   # h resident across vocab tiles
            pl.BlockSpec((tv, D), lambda v: (v, 0)),
        ],
        out_specs=pl.BlockSpec((B, tv), lambda v: (0, v)),
        compiler_params=pltpu.CompilerParams(
            dimension_semantics=("parallel",),            # vocab tiles feed both v7x TCs
            vmem_limit_bytes=vmem_limit),
    )(h2, w)
    return out[:, :V] if Vp != V else out


# ----------------------------- T5 building blocks (JAX glue) -----------------------------
def t5_layer_norm(x, w, eps=LN_EPS):
    # T5 LayerNorm = RMSNorm (no mean subtraction, no bias)
    var = jnp.mean(jnp.square(x.astype(jnp.float32)), axis=-1, keepdims=True)
    return (x * jax.lax.rsqrt(var + eps)) * w


def dense(x, w, activation=None):
    """(B, S, Din) @ (Din, Dout). Launch-overhead-bound tiny shapes fall back to jnp.dot
    (XLA fuses them with surrounding norm/residual ops); MXU-worthy shapes use the tiled
    Pallas matmul with bf16 output (halves HBM writeback of intermediate activations)."""
    B, S, Din = x.shape
    Dout = w.shape[1]
    x2 = x.reshape(B * S, Din)
    if B * S >= 128 and Din >= 128 and Dout >= 128:
        y = pallas_matmul(x2, w, activation, out_dtype=jnp.bfloat16)
    else:
        y = jnp.dot(x2, w, preferred_element_type=jnp.float32)
        if activation is not None:
            y = activation(y)
    return y.reshape(B, S, Dout)


def _attn_core(q, k, v, wo, bias):
    # T5 attention: no 1/sqrt(d_k) scaling; `bias` carries position bias + masks.
    # TODO(synk): at real sequence lengths, replace with a flash-attention Pallas kernel
    # (online softmax) to avoid materializing the (B,H,Sq,Sk) scores in HBM.
    B, Sq, _ = q.shape
    Sk = k.shape[1]
    q = q.reshape(B, Sq, N_HEADS, D_KV).transpose(0, 2, 1, 3)
    k = k.reshape(B, Sk, N_HEADS, D_KV).transpose(0, 2, 1, 3)
    v = v.reshape(B, Sk, N_HEADS, D_KV).transpose(0, 2, 1, 3)
    scores = jnp.einsum("bhqd,bhkd->bhqk", q, k) + bias
    probs = jax.nn.softmax(scores, axis=-1)
    ctx = jnp.einsum("bhqk,bhkd->bhqd", probs, v)
    ctx = ctx.transpose(0, 2, 1, 3).reshape(B, Sq, INNER)
    return dense(ctx, wo)


def self_attention(x, wqkv, wo, bias):
    qkv = dense(x, wqkv)                     # single fused (D, 3*inner) projection
    q, k, v = jnp.split(qkv, 3, axis=-1)
    return _attn_core(q, k, v, wo, bias)


def cross_attention(x_q, x_kv, wq, wkv, wo, bias):
    q = dense(x_q, wq)
    kv = dense(x_kv, wkv)                    # fused (D, 2*inner) k/v projection
    k, v = jnp.split(kv, 2, axis=-1)
    return _attn_core(q, k, v, wo, bias)


def ffn(x, wi, wo):
    # relu fused into the wi matmul finalize (on the Pallas path), then the wo matmul
    return dense(dense(x, wi, activation=jax.nn.relu), wo)


def relative_position_bucket(relative_position, bidirectional,
                             num_buckets=REL_BUCKETS, max_distance=REL_MAX_DIST):
    relative_buckets = jnp.zeros_like(relative_position)
    if bidirectional:
        num_buckets //= 2
        relative_buckets = relative_buckets + (relative_position > 0).astype(jnp.int32) * num_buckets
        relative_position = jnp.abs(relative_position)
    else:
        relative_position = -jnp.minimum(relative_position, 0)
    max_exact = num_buckets // 2
    is_small = relative_position < max_exact
    rp = jnp.maximum(relative_position, 1).astype(jnp.float32)
    rel_if_large = max_exact + (
        jnp.log(rp / max_exact) / jnp.log(max_distance / max_exact) * (num_buckets - max_exact)
    ).astype(jnp.int32)
    rel_if_large = jnp.minimum(rel_if_large, num_buckets - 1)
    return relative_buckets + jnp.where(is_small, relative_position, rel_if_large)


def compute_position_bias(rel_emb, q_len, k_len, bidirectional):
    ctx = jnp.arange(q_len)[:, None]
    mem = jnp.arange(k_len)[None, :]
    buckets = relative_position_bucket(mem - ctx, bidirectional)   # (q, k)
    values = rel_emb[buckets]                                       # (q, k, H)
    return values.transpose(2, 0, 1)[None]                          # (1, H, q, k)


def encoder_layer(x, p, bias):
    h = t5_layer_norm(x, p["ln1"])
    x = x + self_attention(h, p["qkv"], p["o"], bias)
    h = t5_layer_norm(x, p["ln2"])
    x = x + ffn(h, p["wi"], p["wo"])
    return x


def decoder_layer(x, enc_out, p, self_bias, cross_bias):
    h = t5_layer_norm(x, p["ln1"])
    x = x + self_attention(h, p["sqkv"], p["so"], self_bias)
    h = t5_layer_norm(x, p["ln2"])
    x = x + cross_attention(h, enc_out, p["cq"], p["ckv"], p["co"], cross_bias)
    h = t5_layer_norm(x, p["ln3"])
    x = x + ffn(h, p["wi"], p["wo"])
    return x


# ----------------------------- T5Splade forward -----------------------------
def t5_splade_forward(params, input_ids, attention_mask, decoder_input_ids):
    emb = params["shared"]                       # (VOCAB, D_MODEL), tied with LM head
    B, Se = input_ids.shape
    Sd = decoder_input_ids.shape[1]
    amask_f = attention_mask.astype(jnp.float32)

    # ---- encoder ----
    enc_mask_bias = (1.0 - amask_f)[:, None, None, :] * NEG_INF               # (B,1,1,Se)
    enc_bias = compute_position_bias(params["enc_rel"], Se, Se, True) + enc_mask_bias
    x = emb[input_ids]
    for lp in params["enc_layers"]:
        x = encoder_layer(x, lp, enc_bias)
    enc_out = t5_layer_norm(x, params["enc_final_ln"])

    # ---- decoder ----
    causal = jnp.tril(jnp.ones((Sd, Sd), jnp.float32))
    self_bias = (compute_position_bias(params["dec_rel"], Sd, Sd, False)
                 + (1.0 - causal)[None, None] * NEG_INF)                      # (1,H,Sd,Sd)
    cross_bias = enc_mask_bias                                                # (B,1,1,Se)
    y = emb[decoder_input_ids]
    for lp in params["dec_layers"]:
        y = decoder_layer(y, enc_out, lp, self_bias, cross_bias)
    y = t5_layer_norm(y, params["dec_final_ln"])

    # ---- tied LM head + SPLADE pooling (fused Pallas kernel; scaling+mask folded) ----
    reps = splade_head(y, emb, attention_mask)   # max_s( log(1+relu(logits)) * mask )
    return reps


# ----------------------------- deterministic parameter init -----------------------------
def init_params(key):
    counter = [0]

    def nxt():
        counter[0] += 1
        return jax.random.fold_in(key, counter[0])

    def nrm(shape, scale=0.05):
        return jax.random.normal(nxt(), shape, jnp.float32) * scale

    def enc_layer_params():
        return {"ln1": jnp.ones((D_MODEL,), jnp.float32),
                "ln2": jnp.ones((D_MODEL,), jnp.float32),
                "qkv": nrm((D_MODEL, 3 * INNER)),     # fused q/k/v projection
                "o": nrm((INNER, D_MODEL)),
                "wi": nrm((D_MODEL, D_FF)),
                "wo": nrm((D_FF, D_MODEL))}

    def dec_layer_params():
        return {"ln1": jnp.ones((D_MODEL,), jnp.float32),
                "ln2": jnp.ones((D_MODEL,), jnp.float32),
                "ln3": jnp.ones((D_MODEL,), jnp.float32),
                "sqkv": nrm((D_MODEL, 3 * INNER)),    # fused self-attn q/k/v
                "so": nrm((INNER, D_MODEL)),
                "cq": nrm((D_MODEL, INNER)),
                "ckv": nrm((D_MODEL, 2 * INNER)),     # fused cross-attn k/v
                "co": nrm((INNER, D_MODEL)),
                "wi": nrm((D_MODEL, D_FF)),
                "wo": nrm((D_FF, D_MODEL))}

    return {
        "shared": nrm((VOCAB, D_MODEL), scale=1.0),
        "enc_rel": nrm((REL_BUCKETS, N_HEADS)),
        "dec_rel": nrm((REL_BUCKETS, N_HEADS)),
        "enc_layers": [enc_layer_params() for _ in range(N_ENC_LAYERS)],
        "dec_layers": [dec_layer_params() for _ in range(N_DEC_LAYERS)],
        "enc_final_ln": jnp.ones((D_MODEL,), jnp.float32),
        "dec_final_ln": jnp.ones((D_MODEL,), jnp.float32),
    }


# ----------------------------- main -----------------------------
if __name__ == "__main__":
    key = jax.random.PRNGKey(0)
    params = init_params(jax.random.fold_in(key, 1))

    B, S = 2, 8
    input_ids = jax.random.randint(jax.random.fold_in(key, 2), (B, S), 0, VOCAB, dtype=jnp.int32)
    decoder_input_ids = jax.random.randint(jax.random.fold_in(key, 3), (B, S), 0, VOCAB, dtype=jnp.int32)
    attention_mask = jnp.ones((B, S), jnp.int32).at[1, 6:].set(0)   # second example padded

    # full forward (SPLADE Pallas head exercised; tiny projections use the jnp.dot fallback)
    forward = jax.jit(t5_splade_forward)
    reps = jax.block_until_ready(forward(params, input_ids, attention_mask, decoder_input_ids))
    assert reps.shape == (B, VOCAB) and reps.dtype == jnp.float32
    assert bool(jnp.all(jnp.isfinite(reps))) and bool(jnp.all(reps >= 0.0))

    # standalone numerical check of the fused SPLADE head against the PyTorch formula
    ht = jax.random.normal(jax.random.fold_in(key, 9), (B, S, D_MODEL), jnp.float32)
    logits_ref = jnp.einsum("bsd,vd->bsv", ht * (D_MODEL ** -0.5), params["shared"])
    ref = jnp.max(jnp.log1p(jax.nn.relu(logits_ref))
                  * attention_mask[:, :, None].astype(jnp.float32), axis=1)
    got_head = jax.block_until_ready(splade_head(ht, params["shared"], attention_mask))
    assert bool(jnp.allclose(got_head, ref, rtol=5e-2, atol=5e-2))

    # standalone check of the tiled Pallas matmul at an MXU-worthy, deliberately unaligned
    # shape (exercises the (i,j,k) grid, zero-padding, relu fusion and bf16 output)
    a = jax.random.normal(jax.random.fold_in(key, 7), (200, 96), jnp.float32) * 0.5
    bm = jax.random.normal(jax.random.fold_in(key, 8), (96, 320), jnp.float32) * 0.5
    got_mm = jax.block_until_ready(
        pallas_matmul(a, bm, activation=jax.nn.relu, out_dtype=jnp.bfloat16))
    want_mm = jax.nn.relu(jnp.dot(a.astype(jnp.bfloat16), bm.astype(jnp.bfloat16),
                                  preferred_element_type=jnp.float32))
    assert got_mm.shape == (200, 320) and got_mm.dtype == jnp.bfloat16
    assert bool(jnp.allclose(got_mm.astype(jnp.float32), want_mm, rtol=2e-2, atol=2e-2))

    # TODO(synk): HF `from_pretrained` checkpoint loading has no in-script equivalent;
    # parameters are synthetic and deterministic.
    print("KERNEL_OK")
</pallas_src>

<mosaic_0001>
module attributes {stable_mosaic.version = 11 : i64} {
  func.func @_splade_kernel(%arg0: i32, %arg1: memref<16x32xbf16, #tpu.memory_space<vmem>>, %arg2: memref<512x32xbf16, #tpu.memory_space<vmem>>, %arg3: memref<2x512xf32, #tpu.memory_space<vmem>>) attributes {dimension_semantics = [#tpu.dimension_semantics<parallel>], iteration_bounds = array<i64: 2>, scalar_prefetch = 0 : i64, scratch_operands = 0 : i64, tpu.core_type = #tpu.core_type<tc>, window_params = [{pipeline_mode = #tpu.pipeline_mode<synchronous>, transform_indices = @transform_0, window_bounds = array<i64: 16, 32>}, {transform_indices = @transform_1, window_bounds = array<i64: 512, 32>}, {transform_indices = @transform_2, window_bounds = array<i64: 2, 512>}]} {
    %c0 = arith.constant 0 : index
    %c0_0 = arith.constant 0 : index
    %0 = vector.load %arg2[%c0, %c0_0] : memref<512x32xbf16, #tpu.memory_space<vmem>>, vector<512x32xbf16>
    %c0_1 = arith.constant 0 : index
    %c0_2 = arith.constant 0 : index
    %1 = vector.load %arg1[%c0_1, %c0_2] : memref<16x32xbf16, #tpu.memory_space<vmem>>, vector<16x32xbf16>
    %cst = arith.constant dense<0.000000e+00> : vector<16x512xf32>
    %2 = tpu.matmul %1, %0, %cst {dimension_numbers = #tpu.dot_dimension_numbers<[1], [1], [0], [0], [0, 0, 1, 0], [], []>} : vector<16x32xbf16>, vector<512x32xbf16>, vector<16x512xf32> -> vector<16x512xf32>
    %3 = vector.shape_cast %2 : vector<16x512xf32> to vector<2x8x512xf32>
    %cst_3 = arith.constant dense<0xFF800000> : vector<2x512xf32>
    %4 = vector.multi_reduction <maximumf>, %3, %cst_3 [1] : vector<2x8x512xf32> to vector<2x512xf32>
    %cst_4 = arith.constant 0.000000e+00 : f32
    %5 = vector.broadcast %cst_4 : f32 to vector<2x512xf32>
    %6 = arith.maximumf %4, %5 : vector<2x512xf32>
    %cst_5 = arith.constant 1.000000e+00 : f32
    %7 = vector.broadcast %cst_5 : f32 to vector<2x512xf32>
    %8 = arith.addf %7, %6 : vector<2x512xf32>
    %9 = math.log %8 : vector<2x512xf32>
    %c0_6 = arith.constant 0 : index
    %c0_7 = arith.constant 0 : index
    %10 = vector.load %arg3[%c0_6, %c0_7] : memref<2x512xf32, #tpu.memory_space<vmem>>, vector<2x512xf32>
    tpu.vector_store %arg3[%c0_6, %c0_7], %9 {strides = array<i32>} : memref<2x512xf32, #tpu.memory_space<vmem>>, vector<2x512xf32>,
    return
  }
  func.func @transform_0(%arg0: i32) -> (i32, i32) {
    %c0_i32 = arith.constant 0 : i32
    %c0_i32_0 = arith.constant 0 : i32
    %c0_i32_1 = arith.constant 0 : i32
    return %c0_i32, %c0_i32_0 : i32, i32
  }
  func.func @transform_1(%arg0: i32) -> (i32, i32) {
    %c0_i32 = arith.constant 0 : i32
    %c0_i32_0 = arith.constant 0 : i32
    return %arg0, %c0_i32 : i32, i32
  }
  func.func @transform_2(%arg0: i32) -> (i32, i32) {
    %c0_i32 = arith.constant 0 : i32
    %c0_i32_0 = arith.constant 0 : i32
    return %c0_i32, %arg0 : i32, i32
  }
}

</mosaic_0001>

<llo_original>
// kernel: t5_splade_forward.1
$region0: #{t5_splade_forward.1}
  #allocation0 [shape = 'u32[]', space=smem, size = 0x4, offset = 0x4, fixed_abs, tag = 'smem constant byte address 0x4 - core index']
  #allocation1 [shape = 'u32[144,128]{1,0:T(1,128)}', space=vmem, size = 0x12000, scoped, tag = 'internal scratch']
  %s0 = inlined_call_operand.vmem [shape: bf16[16,32], index: 0, kind: input, shape index: {}]
  %s1 = inlined_call_operand.vmem [shape: bf16[1024,32], index: 1, kind: input, shape index: {}]
  %s2 = inlined_call_operand.hbm [shape: f32[2,1024], index: 2, kind: output, shape index: {}]
  %s3 = sld [smem:[#allocation0]]
  $region41: #{t5_splade_forward.1} parent=0
    _
  %s5 = ssub.s32 1, %s3
  %s6 = scalar_select 0, %s5, %s3
  $region1: #{t5_splade_forward.1} parent=0
    #allocation2 [shape = 'u8[8192]{0}', space=vmem, size = 0x2000, scoped, tag = 'output window, operand 0']
    #allocation3 [shape = 's32[2]{0}', space=sflag, size = 0x8, scoped, tag = 'scoped memory for t5_splade_forward.1']
    %7 = vsyncpa [#allocation3], 0
    %s8 = scalar_lea.sflag [#allocation3], 1
    %9 = vsyncpa %s8, 0
    loop: start=0, step=1, limit=4
    $region2: #{t5_splade_forward.1} parent=1 // loop_pre_header
      _
    $region3: #{t5_splade_forward.1} parent=1 // loop_header
      %s11 = sphi 0, %s15
      %p12 = scmp.ge.s32.totalorder %s11, 4
      %s19 = sphi 0, %s19
      %s21 = sphi 0, %s19
      %s22 = sphi 0, %s21
      %s36 = sphi 0, %s22
      %s42 = sphi 0, %s44
      %s45 = sphi 0, %s42
      %s46 = sphi 0, %s45
      %s62 = sphi 0, %s46
      %s68 = sphi 0, %s70
      %s71 = sphi 0, %s68
      %s72 = sphi 0, %s71
      %s88 = sphi 0, %s72
    $region4: #{t5_splade_forward.1} parent=1 // loop_header_branch
      %14 = sbr.rel (%p12) target = $region8
    $region5: #{t5_splade_forward.1} parent=1 // loop_body
      %s16 = ssub.s32 %s11, 1
      %s17 = ssub.s32 %s11, 2
      %s18 = sadd.s32 %s11, 1
      %s20 = sadd.s32 %s19, 1
      %p23 = scmp.eq.s32.totalorder %s11, 1
      %p24 = scmp.ne.s32.totalorder %s19, %s21
      %p25 = scmp.eq.s32.totalorder %s11, 0
      %p26 = por %p24, %p25
      %p27 = scmp.ne.s32.totalorder %s19, %s21
      %p28 = scmp.eq.s32.totalorder %s16, 1
      %p29 = por %p27, %p28
      %p30 = scmp.ne.s32.totalorder %s21, %s22
      %p31 = scmp.eq.s32.totalorder %s16, 0
      %p32 = por %p30, %p31
      %p33 = scmp.ne.s32.totalorder %s21, %s22
      %p34 = scmp.eq.s32.totalorder %s17, 1
      %p35 = por %p33, %p34
      %p37 = scmp.ne.s32.totalorder %s22, %s36
      %p38 = scmp.eq.s32.totalorder %s17, 0
      %p39 = por %p37, %p38
      %s40 = ssub.s32 %s11, %s18
      %p41 = scmp.eq.s32.totalorder %s40, 0
      %s43 = sadd.s32 %s42, 1
      %s44 = scalar_select %p41, %s42, %s43
      %p47 = pneg %p41
      %p48 = scmp.eq.s32.totalorder %s11, 1
      %p49 = por %p47, %p48
      %p50 = scmp.ne.s32.totalorder %s42, %s45
      %p51 = scmp.eq.s32.totalorder %s11, 0
      %p52 = por %p50, %p51
      %p53 = scmp.ne.s32.totalorder %s42, %s45
      %p54 = scmp.eq.s32.totalorder %s16, 1
      %p55 = por %p53, %p54
      %p56 = scmp.ne.s32.totalorder %s45, %s46
      %p57 = scmp.eq.s32.totalorder %s16, 0
      %p58 = por %p56, %p57
      %p59 = scmp.ne.s32.totalorder %s45, %s46
      %p60 = scmp.eq.s32.totalorder %s17, 1
      %p61 = por %p59, %p60
      %p63 = scmp.ne.s32.totalorder %s46, %s62
      %p64 = scmp.eq.s32.totalorder %s17, 0
      %p65 = por %p63, %p64
      %s66 = ssub.s32 %s11, %s18
      %p67 = scmp.eq.s32.totalorder %s66, 0
      %s69 = sadd.s32 %s68, 1
      %s70 = scalar_select %p67, %s68, %s69
      %p73 = pneg %p67
      %p74 = scmp.eq.s32.totalorder %s11, 1
      %p75 = por %p73, %p74
      %p76 = scmp.ne.s32.totalorder %s68, %s71
      %p77 = scmp.eq.s32.totalorder %s11, 0
      %p78 = por %p76, %p77
      %p79 = scmp.ne.s32.totalorder %s68, %s71
      %p80 = scmp.eq.s32.totalorder %s16, 1
      %p81 = por %p79, %p80
      %p82 = scmp.ne.s32.totalorder %s71, %s72
      %p83 = scmp.eq.s32.totalorder %s16, 0
      %p84 = por %p82, %p83
      %p85 = scmp.ne.s32.totalorder %s71, %s72
      %p86 = scmp.eq.s32.totalorder %s17, 1
      %p87 = por %p85, %p86
      %p89 = scmp.ne.s32.totalorder %s72, %s88
      %p90 = scmp.eq.s32.totalorder %s17, 0
      %p91 = por %p89, %p90
      %p92 = scmp.le.s32.totalorder 1, %s11
      %p93 = scmp.lt.s32.totalorder %s11, 3
      %p94 = pnand %p92, %p93
      %p95 = pneg %p94
      // Predicated region
      $region9: #{t5_splade_forward.1} parent=5 // pred_check
        _
      $region10: #{t5_splade_forward.1} parent=5 // pred_check_branch
        %97 = sbr.rel (%p94) target = $region12
      $region11: #{t5_splade_forward.1} parent=5 // pred_region
        %s98 = ssub.s32 %s11, 1
        // Predicated region
        $region13: #{t5_splade_forward.1} parent=11 // pred_check
          %p99 = pneg %p32
        $region14: #{t5_splade_forward.1} parent=11 // pred_check_branch
          %101 = sbr.rel (%p99) target = $region16
        $region15: #{t5_splade_forward.1} parent=11 // pred_region
          _
        $region16: #{t5_splade_forward.1} parent=11 // pred_fallthru
          _
      $region12: #{t5_splade_forward.1} parent=5 // pred_fallthru
        _
      %p102 = scmp.lt.s32.totalorder %s11, 2
      // Predicated region
      $region17: #{t5_splade_forward.1} parent=5 // pred_check
        %p103 = pneg %p102
      $region18: #{t5_splade_forward.1} parent=5 // pred_check_branch
        %105 = sbr.rel (%p103) target = $region20
      $region19: #{t5_splade_forward.1} parent=5 // pred_region
        // Predicated region
        $region21: #{t5_splade_forward.1} parent=19 // pred_check
          %p106 = pneg %p52
        $region22: #{t5_splade_forward.1} parent=19 // pred_check_branch
          %108 = sbr.rel (%p106) target = $region24
        $region23: #{t5_splade_forward.1} parent=19 // pred_region
          %s109 = smul.u32 64, %s11
          %p110 = scmp.lt.s32.totalorder %s109, 127
          %s111 = scalar_select %p110, %s109, 127
          %s112 = smul.addr %s111, 4
          %s113 = scalar_lea.vmem %s1, %s112
          %s114 = smul.u32 64, %s11
        $region24: #{t5_splade_forward.1} parent=19 // pred_fallthru
          _
      $region20: #{t5_splade_forward.1} parent=5 // pred_fallthru
        _
      %p115 = scmp.le.s32.totalorder 1, %s11
      %p116 = scmp.lt.s32.totalorder %s11, 3
      %p117 = pnand %p115, %p116
      %p118 = pneg %p117
      // Predicated region
      $region25: #{t5_splade_forward.1} parent=5 // pred_check
        _
      $region26: #{t5_splade_forward.1} parent=5 // pred_check_branch
        %120 = sbr.rel (%p117) target = $region28
      $region27: #{t5_splade_forward.1} parent=5 // pred_region
        %s121 = ssub.s32 %s11, 1
        %p122 = pneg %p32
        %p123 = pneg %p29
        %s124 = smul.u32 64, %s16
        %p125 = scmp.lt.s32.totalorder %s124, 127
        %s126 = scalar_select %p125, %s124, 127
        %s127 = smul.addr %s126, 4
        %s128 = scalar_lea.vmem %s1, %s127
        %p129 = pneg %p58
        %p130 = pneg %p55
        %p131 = pneg %p84
        %p132 = pneg %p81
        %s133 = sand.u32 %s71, 1
        %s134 = scalar_lea.sflag [#allocation3], %s133
        %s135 = sand.u32 %s71, 1
        %s136 = smul.addr %s135, 8
        %s137 = scalar_lea.vmem [#allocation2], %s136
        %s138 = smul.u32 64, %s16
        %p139 = scmp.lt.s32.totalorder %s138, 127
        %s140 = scalar_select %p139, %s138, 127
        %s141 = smul.addr %s140, 4
        %s142 = scalar_lea.vmem %s1, %s141
        %s143 = smul.u32 64, %s16
        %s144 = smul.u32 4, %s16
        %v146 = vld [vmem:[%s142] sm:$0xf]
        %v147 = vld [vmem:[%s142 + $0x4] sm:$0xf]
        %v148 = vld [vmem:[%s142 + $0x8] sm:$0xf]
        %v149 = vld [vmem:[%s142 + $0xc] sm:$0xf]
        %v150 = vld [vmem:[%s142 + $0x10] sm:$0xf]
        %v151 = vld [vmem:[%s142 + $0x14] sm:$0xf]
        %v152 = vld [vmem:[%s142 + $0x18] sm:$0xf]
        %v153 = vld [vmem:[%s142 + $0x1c] sm:$0xf]
        %v154 = vld [vmem:[%s142 + $0x20] sm:$0xf]
        %v155 = vld [vmem:[%s142 + $0x24] sm:$0xf]
        %v156 = vld [vmem:[%s142 + $0x28] sm:$0xf]
        %v157 = vld [vmem:[%s142 + $0x2c] sm:$0xf]
        %v158 = vld [vmem:[%s142 + $0x30] sm:$0xf]
        %v159 = vld [vmem:[%s142 + $0x34] sm:$0xf]
        %v160 = vld [vmem:[%s142 + $0x38] sm:$0xf]
        %v161 = vld [vmem:[%s142 + $0x3c] sm:$0xf]
        %v162 = vld [vmem:[%s142 + $0x40] sm:$0xf]
        %v163 = vld [vmem:[%s142 + $0x44] sm:$0xf]
        %v164 = vld [vmem:[%s142 + $0x48] sm:$0xf]
        %v165 = vld [vmem:[%s142 + $0x4c] sm:$0xf]
        %v166 = vld [vmem:[%s142 + $0x50] sm:$0xf]
        %v167 = vld [vmem:[%s142 + $0x54] sm:$0xf]
        %v168 = vld [vmem:[%s142 + $0x58] sm:$0xf]
        %v169 = vld [vmem:[%s142 + $0x5c] sm:$0xf]
        %v170 = vld [vmem:[%s142 + $0x60] sm:$0xf]
        %v171 = vld [vmem:[%s142 + $0x64] sm:$0xf]
        %v172 = vld [vmem:[%s142 + $0x68] sm:$0xf]
        %v173 = vld [vmem:[%s142 + $0x6c] sm:$0xf]
        %v174 = vld [vmem:[%s142 + $0x70] sm:$0xf]
        %v175 = vld [vmem:[%s142 + $0x74] sm:$0xf]
        %v176 = vld [vmem:[%s142 + $0x78] sm:$0xf]
        %v177 = vld [vmem:[%s142 + $0x7c] sm:$0xf]
        %v178 = vld [vmem:[%s142 + $0x80] sm:$0xf]
        %v179 = vld [vmem:[%s142 + $0x84] sm:$0xf]
        %v180 = vld [vmem:[%s142 + $0x88] sm:$0xf]
        %v181 = vld [vmem:[%s142 + $0x8c] sm:$0xf]
        %v182 = vld [vmem:[%s142 + $0x90] sm:$0xf]
        %v183 = vld [vmem:[%s142 + $0x94] sm:$0xf]
        %v184 = vld [vmem:[%s142 + $0x98] sm:$0xf]
        %v185 = vld [vmem:[%s142 + $0x9c] sm:$0xf]
        %v186 = vld [vmem:[%s142 + $0xa0] sm:$0xf]
        %v187 = vld [vmem:[%s142 + $0xa4] sm:$0xf]
        %v188 = vld [vmem:[%s142 + $0xa8] sm:$0xf]
        %v189 = vld [vmem:[%s142 + $0xac] sm:$0xf]
        %v190 = vld [vmem:[%s142 + $0xb0] sm:$0xf]
        %v191 = vld [vmem:[%s142 + $0xb4] sm:$0xf]
        %v192 = vld [vmem:[%s142 + $0xb8] sm:$0xf]
        %v193 = vld [vmem:[%s142 + $0xbc] sm:$0xf]
        %v194 = vld [vmem:[%s142 + $0xc0] sm:$0xf]
        %v195 = vld [vmem:[%s142 + $0xc4] sm:$0xf]
        %v196 = vld [vmem:[%s142 + $0xc8] sm:$0xf]
        %v197 = vld [vmem:[%s142 + $0xcc] sm:$0xf]
        %v198 = vld [vmem:[%s142 + $0xd0] sm:$0xf]
        %v199 = vld [vmem:[%s142 + $0xd4] sm:$0xf]
        %v200 = vld [vmem:[%s142 + $0xd8] sm:$0xf]
        %v201 = vld [vmem:[%s142 + $0xdc] sm:$0xf]
        %v202 = vld [vmem:[%s142 + $0xe0] sm:$0xf]
        %v203 = vld [vmem:[%s142 + $0xe4] sm:$0xf]
        %v204 = vld [vmem:[%s142 + $0xe8] sm:$0xf]
        %v205 = vld [vmem:[%s142 + $0xec] sm:$0xf]
        %v206 = vld [vmem:[%s142 + $0xf0] sm:$0xf]
        %v207 = vld [vmem:[%s142 + $0xf4] sm:$0xf]
        %v208 = vld [vmem:[%s142 + $0xf8] sm:$0xf]
        %v209 = vld [vmem:[%s142 + $0xfc] sm:$0xf]
        %v210 = vld [vmem:[%s0] sm:$0xf]
        %v211 = vld [vmem:[%s0 + $0x4] sm:$0xf]
        %v214 = vunpack.c.l.b16 %v210
        %v215 = vunpack.c.l.b16 %v211
        %v216 = vpack.c.b16 %v215, %v214
        %v281 = vunpack.c.l.b16 %v146
        %v282 = vunpack.c.l.b16 %v147
        %v283 = vunpack.c.l.b16 %v148
        %v284 = vunpack.c.l.b16 %v149
        %v285 = vunpack.c.l.b16 %v150
        %v286 = vunpack.c.l.b16 %v151
        %v287 = vunpack.c.l.b16 %v152
        %v288 = vunpack.c.l.b16 %v153
        %v289 = vunpack.c.l.b16 %v154
        %v290 = vunpack.c.l.b16 %v155
        %v291 = vunpack.c.l.b16 %v156
        %v292 = vunpack.c.l.b16 %v157
        %v293 = vunpack.c.l.b16 %v158
        %v294 = vunpack.c.l.b16 %v159
        %v295 = vunpack.c.l.b16 %v160
        %v296 = vunpack.c.l.b16 %v161
        %v297 = vunpack.c.l.b16 %v162
        %v298 = vunpack.c.l.b16 %v163
        %v299 = vunpack.c.l.b16 %v164
        %v300 = vunpack.c.l.b16 %v165
        %v301 = vunpack.c.l.b16 %v166
        %v302 = vunpack.c.l.b16 %v167
        %v303 = vunpack.c.l.b16 %v168
        %v304 = vunpack.c.l.b16 %v169
        %v305 = vunpack.c.l.b16 %v170
        %v306 = vunpack.c.l.b16 %v171
        %v307 = vunpack.c.l.b16 %v172
        %v308 = vunpack.c.l.b16 %v173
        %v309 = vunpack.c.l.b16 %v174
        %v310 = vunpack.c.l.b16 %v175
        %v311 = vunpack.c.l.b16 %v176
        %v312 = vunpack.c.l.b16 %v177
        %v313 = vunpack.c.l.b16 %v178
        %v314 = vunpack.c.l.b16 %v179
        %v315 = vunpack.c.l.b16 %v180
        %v316 = vunpack.c.l.b16 %v181
        %v317 = vunpack.c.l.b16 %v182
        %v318 = vunpack.c.l.b16 %v183
        %v319 = vunpack.c.l.b16 %v184
        %v320 = vunpack.c.l.b16 %v185
        %v321 = vunpack.c.l.b16 %v186
        %v322 = vunpack.c.l.b16 %v187
        %v323 = vunpack.c.l.b16 %v188
        %v324 = vunpack.c.l.b16 %v189
        %v325 = vunpack.c.l.b16 %v190
        %v326 = vunpack.c.l.b16 %v191
        %v327 = vunpack.c.l.b16 %v192
        %v328 = vunpack.c.l.b16 %v193
        %v329 = vunpack.c.l.b16 %v194
        %v330 = vunpack.c.l.b16 %v195
        %v331 = vunpack.c.l.b16 %v196
        %v332 = vunpack.c.l.b16 %v197
        %v333 = vunpack.c.l.b16 %v198
        %v334 = vunpack.c.l.b16 %v199
        %v335 = vunpack.c.l.b16 %v200
        %v336 = vunpack.c.l.b16 %v201
        %v337 = vunpack.c.l.b16 %v202
        %v338 = vunpack.c.l.b16 %v203
        %v339 = vunpack.c.l.b16 %v204
        %v340 = vunpack.c.l.b16 %v205
        %v341 = vunpack.c.l.b16 %v206
        %v342 = vunpack.c.l.b16 %v207
        %v343 = vunpack.c.l.b16 %v208
        %v344 = vunpack.c.l.b16 %v209
        %v345 = vpack.c.b16 %v282, %v281
        %v346 = vpack.c.b16 %v284, %v283
        %v347 = vpack.c.b16 %v286, %v285
        %v348 = vpack.c.b16 %v288, %v287
        %v349 = vpack.c.b16 %v290, %v289
        %v350 = vpack.c.b16 %v292, %v291
        %v351 = vpack.c.b16 %v294, %v293
        %v352 = vpack.c.b16 %v296, %v295
        %v353 = vpack.c.b16 %v298, %v297
        %v354 = vpack.c.b16 %v300, %v299
        %v355 = vpack.c.b16 %v302, %v301
        %v356 = vpack.c.b16 %v304, %v303
        %v357 = vpack.c.b16 %v306, %v305
        %v358 = vpack.c.b16 %v308, %v307
        %v359 = vpack.c.b16 %v310, %v309
        %v360 = vpack.c.b16 %v312, %v311
        %v361 = vpack.c.b16 %v314, %v313
        %v362 = vpack.c.b16 %v316, %v315
        %v363 = vpack.c.b16 %v318, %v317
        %v364 = vpack.c.b16 %v320, %v319
        %v365 = vpack.c.b16 %v322, %v321
        %v366 = vpack.c.b16 %v324, %v323
        %v367 = vpack.c.b16 %v326, %v325
        %v368 = vpack.c.b16 %v328, %v327
        %v369 = vpack.c.b16 %v330, %v329
        %v370 = vpack.c.b16 %v332, %v331
        %v371 = vpack.c.b16 %v334, %v333
        %v372 = vpack.c.b16 %v336, %v335
        %v373 = vpack.c.b16 %v338, %v337
        %v374 = vpack.c.b16 %v340, %v339
        %v375 = vpack.c.b16 %v342, %v341
        %v376 = vpack.c.b16 %v344, %v343
        %vm377 = vcmask 261120
        %v379 = vsel %vm377, %v216, 0
        %v382 = vsel %vm377, %v345, 0
        %v385 = vsel %vm377, %v346, 0
        %v388 = vsel %vm377, %v347, 0
        %v391 = vsel %vm377, %v348, 0
        %v394 = vsel %vm377, %v349, 0
        %v397 = vsel %vm377, %v350, 0
        %v400 = vsel %vm377, %v351, 0
        %v403 = vsel %vm377, %v352, 0
        %v406 = vsel %vm377, %v353, 0
        %v409 = vsel %vm377, %v354, 0
        %v412 = vsel %vm377, %v355, 0
        %v415 = vsel %vm377, %v356, 0
        %v418 = vsel %vm377, %v357, 0
        %v421 = vsel %vm377, %v358, 0
        %v424 = vsel %vm377, %v359, 0
        %v427 = vsel %vm377, %v360, 0
        %v430 = vsel %vm377, %v361, 0
        %v433 = vsel %vm377, %v362, 0
        %v436 = vsel %vm377, %v363, 0
        %v439 = vsel %vm377, %v364, 0
        %v442 = vsel %vm377, %v365, 0
        %v445 = vsel %vm377, %v366, 0
        %v448 = vsel %vm377, %v367, 0
        %v451 = vsel %vm377, %v368, 0
        %v454 = vsel %vm377, %v369, 0
        %v457 = vsel %vm377, %v370, 0
        %v460 = vsel %vm377, %v371, 0
        %v463 = vsel %vm377, %v372, 0
        %v466 = vsel %vm377, %v373, 0
        %v469 = vsel %vm377, %v374, 0
        %v472 = vsel %vm377, %v375, 0
        %v475 = vsel %vm377, %v376, 0
        %477 = vmatprep.subr.bf16.mxu0 0
        %478 = vmatpush1.bf16.xpose.msra.mxu0 %v382
        %479 = vmatprep.subr.bf16.mxu0 0
        %480 = vmatpush1.bf16.xpose.msra.mxu0 %v385
        %481 = vmatprep.subr.bf16.mxu0 0
        %482 = vmatpush1.bf16.xpose.msra.mxu0 %v388
        %483 = vmatprep.subr.bf16.mxu0 0
        %484 = vmatpush1.bf16.xpose.msra.mxu0 %v391
        %485 = vmatprep.subr.bf16.mxu0 0
        %486 = vmatpush1.bf16.xpose.msra.mxu0 %v394
        %487 = vmatprep.subr.bf16.mxu0 0
        %488 = vmatpush1.bf16.xpose.msra.mxu0 %v397
        %489 = vmatprep.subr.bf16.mxu0 0
        %490 = vmatpush1.bf16.xpose.msra.mxu0 %v400
        %491 = vmatprep.subr.bf16.mxu0 0
        %492 = vmatpush1.bf16.xpose.msra.mxu0 %v403
        %493 = vmatprep.subr.bf16.mxu0 0
        %494 = vmatpush1.bf16.xpose.msra.mxu0 %v406
        %495 = vmatprep.subr.bf16.mxu0 0
        %496 = vmatpush1.bf16.xpose.msra.mxu0 %v409
        %497 = vmatprep.subr.bf16.mxu0 0
        %498 = vmatpush1.bf16.xpose.msra.mxu0 %v412
        %499 = vmatprep.subr.bf16.mxu0 0
        %500 = vmatpush1.bf16.xpose.msra.mxu0 %v415
        %501 = vmatprep.subr.bf16.mxu0 0
        %502 = vmatpush1.bf16.xpose.msra.mxu0 %v418
        %503 = vmatprep.subr.bf16.mxu0 0
        %504 = vmatpush1.bf16.xpose.msra.mxu0 %v421
        %505 = vmatprep.subr.bf16.mxu0 0
        %506 = vmatpush1.bf16.xpose.msra.mxu0 %v424
        %507 = vmatprep.subr.bf16.mxu0 0
        %508 = vmatpush1.bf16.xpose.msra.mxu0 %v427
        %509 = vmatprep.mubr.bf16.mxu0 0
        %510 = vmatmul.mubr.bf16.gmra.mrb[0].mxu0 %v379
        %v511 = vpop.f32.mrb[0].mxu0
        %v512 = vadd.f32 0.0, %v511
        %v513 = vpop.f32.mrb[0].mxu0
        %v514 = vadd.f32 0.0, %v513
        %v515 = vpop.f32.mrb[0].mxu0
        %v516 = vadd.f32 0.0, %v515
        %v517 = vpop.f32.mrb[0].mxu0
        %v518 = vadd.f32 0.0, %v517
        %519 = vdwg.mxu0
        %520 = vmatprep.subr.bf16.mxu0 0
        %521 = vmatpush1.bf16.xpose.msra.mxu0 %v430
        %522 = vmatprep.subr.bf16.mxu0 0
        %523 = vmatpush1.bf16.xpose.msra.mxu0 %v433
        %524 = vmatprep.subr.bf16.mxu0 0
        %525 = vmatpush1.bf16.xpose.msra.mxu0 %v436
        %526 = vmatprep.subr.bf16.mxu0 0
        %527 = vmatpush1.bf16.xpose.msra.mxu0 %v439
        %528 = vmatprep.subr.bf16.mxu0 0
        %529 = vmatpush1.bf16.xpose.msra.mxu0 %v442
        %530 = vmatprep.subr.bf16.mxu0 0
        %531 = vmatpush1.bf16.xpose.msra.mxu0 %v445
        %532 = vmatprep.subr.bf16.mxu0 0
        %533 = vmatpush1.bf16.xpose.msra.mxu0 %v448
        %534 = vmatprep.subr.bf16.mxu0 0
        %535 = vmatpush1.bf16.xpose.msra.mxu0 %v451
        %536 = vmatprep.subr.bf16.mxu0 0
        %537 = vmatpush1.bf16.xpose.msra.mxu0 %v454
        %538 = vmatprep.subr.bf16.mxu0 0
        %539 = vmatpush1.bf16.xpose.msra.mxu0 %v457
        %540 = vmatprep.subr.bf16.mxu0 0
        %541 = vmatpush1.bf16.xpose.msra.mxu0 %v460
        %542 = vmatprep.subr.bf16.mxu0 0
        %543 = vmatpush1.bf16.xpose.msra.mxu0 %v463
        %544 = vmatprep.subr.bf16.mxu0 0
        %545 = vmatpush1.bf16.xpose.msra.mxu0 %v466
        %546 = vmatprep.subr.bf16.mxu0 0
        %547 = vmatpush1.bf16.xpose.msra.mxu0 %v469
        %548 = vmatprep.subr.bf16.mxu0 0
        %549 = vmatpush1.bf16.xpose.msra.mxu0 %v472
        %550 = vmatprep.subr.bf16.mxu0 0
        %551 = vmatpush1.bf16.xpose.msra.mxu0 %v475
        %552 = vmatprep.mubr.bf16.mxu0 0
        %553 = vmatmul.mubr.bf16.gmra.mrb[0].mxu0 %v379
        %v554 = vpop.f32.mrb[0].mxu0
        %v555 = vadd.f32 0.0, %v554
        %v556 = vpop.f32.mrb[0].mxu0
        %v557 = vadd.f32 0.0, %v556
        %v558 = vpop.f32.mrb[0].mxu0
        %v559 = vadd.f32 0.0, %v558
        %v560 = vpop.f32.mrb[0].mxu0
        %v561 = vadd.f32 0.0, %v560
        %562 = vdwg.mxu0
        %v563 = vrot.slane %v512, 4
        %v564 = vmax.f32 %v512, %v563
        %v565 = vrot.slane %v564, 2
        %v566 = vmax.f32 %v564, %v565
        %v567 = vrot.slane %v566, 1
        %v568 = vmax.f32 %v566, %v567
        %v569 = vrot.slane %v514, 4
        %v570 = vmax.f32 %v514, %v569
        %v571 = vrot.slane %v570, 2
        %v572 = vmax.f32 %v570, %v571
        %v573 = vrot.slane %v572, 1
        %v574 = vmax.f32 %v572, %v573
        %v575 = vrot.slane %v555, 4
        %v576 = vmax.f32 %v555, %v575
        %v577 = vrot.slane %v576, 2
        %v578 = vmax.f32 %v576, %v577
        %v579 = vrot.slane %v578, 1
        %v580 = vmax.f32 %v578, %v579
        %v581 = vrot.slane %v557, 4
        %v582 = vmax.f32 %v557, %v581
        %v583 = vrot.slane %v582, 2
        %v584 = vmax.f32 %v582, %v583
        %v585 = vrot.slane %v584, 1
        %v586 = vmax.f32 %v584, %v585
        %v587 = vrot.slane %v516, 4
        %v588 = vmax.f32 %v516, %v587
        %v589 = vrot.slane %v588, 2
        %v590 = vmax.f32 %v588, %v589
        %v591 = vrot.slane %v590, 1
        %v592 = vmax.f32 %v590, %v591
        %v593 = vrot.slane %v518, 4
        %v594 = vmax.f32 %v518, %v593
        %v595 = vrot.slane %v594, 2
        %v596 = vmax.f32 %v594, %v595
        %v597 = vrot.slane %v596, 1
        %v598 = vmax.f32 %v596, %v597
        %v599 = vrot.slane %v559, 4
        %v600 = vmax.f32 %v559, %v599
        %v601 = vrot.slane %v600, 2
        %v602 = vmax.f32 %v600, %v601
        %v603 = vrot.slane %v602, 1
        %v604 = vmax.f32 %v602, %v603
        %v605 = vrot.slane %v561, 4
        %v606 = vmax.f32 %v561, %v605
        %v607 = vrot.slane %v606, 2
        %v608 = vmax.f32 %v606, %v607
        %v609 = vrot.slane %v608, 1
        %v610 = vmax.f32 %v608, %v609
        %v611 = vmax.f32 %v568, 0.0
        %v612 = vmax.f32 %v574, 0.0
        %v613 = vmax.f32 %v580, 0.0
        %v614 = vmax.f32 %v586, 0.0
        %v615 = vmax.f32 %v592, 0.0
        %v616 = vmax.f32 %v598, 0.0
        %v617 = vmax.f32 %v604, 0.0
        %v618 = vmax.f32 %v610, 0.0
        %v619 = vadd.f32 %v611, 1.0
        %v620 = vadd.f32 %v612, 1.0
        %v621 = vadd.f32 %v613, 1.0
        %v622 = vadd.f32 %v614, 1.0
        %v623 = vadd.f32 %v615, 1.0
        %v624 = vadd.f32 %v616, 1.0
        %v625 = vadd.f32 %v617, 1.0
        %v626 = vadd.f32 %v618, 1.0
        %v627 = vlog2.pop %v619
        %v628 = vmul.f32 %v627, 0.6931472
        %v629 = vlog2.pop %v620
        %v630 = vmul.f32 %v629, 0.6931472
        %v631 = vlog2.pop %v621
        %v632 = vmul.f32 %v631, 0.6931472
        %v633 = vlog2.pop %v622
        %v634 = vmul.f32 %v633, 0.6931472
        %v635 = vlog2.pop %v623
        %v636 = vmul.f32 %v635, 0.6931472
        %v637 = vlog2.pop %v624
        %v638 = vmul.f32 %v637, 0.6931472
        %v639 = vlog2.pop %v625
        %v640 = vmul.f32 %v639, 0.6931472
        %v641 = vlog2.pop %v626
        %v642 = vmul.f32 %v641, 0.6931472
        %v651 = vcombine.low %v628, %v630
        %v652 = vcombine.low %v632, %v634
        %v654 = vunpack.c.l.s4 1983009808
        %v655 = vunpack.c.0.s8 %v654
        %v656 = vlaneseq
        %v657 = vshrl.u32 %v656, 7
        %v658 = vsub.s32 %v655, %v657
        %v659 = vrot.slane %v651, %v658
        %v661 = vunpack.c.l.s4 1983009808
        %v662 = vunpack.c.0.s8 %v661
        %v663 = vlaneseq
        %v664 = vshrl.u32 %v663, 7
        %v665 = vsub.s32 %v662, %v664
        %v666 = vrot.slane %v652, %v665
        %v667 = vcombine.low %v659, %v666
        %v668 = vcombine.low %v636, %v638
        %v669 = vcombine.low %v640, %v642
        %v671 = vunpack.c.l.s4 1983009808
        %v672 = vunpack.c.0.s8 %v671
        %v673 = vlaneseq
        %v674 = vshrl.u32 %v673, 7
        %v675 = vsub.s32 %v672, %v674
        %v676 = vrot.slane %v668, %v675
        %v678 = vunpack.c.l.s4 1983009808
        %v679 = vunpack.c.0.s8 %v678
        %v680 = vlaneseq
        %v681 = vshrl.u32 %v680, 7
        %v682 = vsub.s32 %v679, %v681
        %v683 = vrot.slane %v669, %v682
        %v684 = vcombine.low %v676, %v683
        %vm685 = vcmask 1044484
        %v686 = vsel %vm685, %v667, %v667
        %vm687 = vcmask 1046534
        %v688 = vsel %vm687, %v667, %v686
        %v689 = vrot.slane %v684, 7
        %vm690 = vcmask 1041409
        %v691 = vsel %vm690, %v689, %v688
        %vm692 = vcmask 1043459
        %v693 = vsel %vm692, %v689, %v691
        %vm694 = vcmask 1045509
        %v695 = vsel %vm694, %v689, %v693
        %vm696 = vcmask 1047559
        %v697 = vsel %vm696, %v689, %v695
        %699 = vst [vmem:[%s137] sm:$0xff] %v697
        %s700 = sand.u32 %s71, 1
        %s701 = scalar_lea.sflag [#allocation3], %s700
        %s702 = sand.u32 %s71, 1
        %s703 = smul.addr %s702, 8
        %s704 = scalar_lea.vmem [#allocation2], %s703
        // Predicated region
        $region29: #{t5_splade_forward.1} parent=27 // pred_check
          %p705 = pneg %p81
        $region30: #{t5_splade_forward.1} parent=27 // pred_check_branch
          %707 = sbr.rel (%p705) target = $region32
        $region31: #{t5_splade_forward.1} parent=27 // pred_region
          %s708 = smul.u32 4, %s16
          %s710 = ssub.s32 128, 128
          %711 = vsyncadd %s701, %s710
          %s712 = smul.addr %s708, 32
          %s713 = scalar_lea.hbm %s2, %s712
          %s715 = sshll.u32 %s704, 4
          %s716 = int_to_ptr.vmem [resolvable:$true] %s715
          %718 = dma.vmem_to_hbm [thread:$0]  %s716, 128, %s713, %s701
        $region32: #{t5_splade_forward.1} parent=27 // pred_fallthru
          _
      $region28: #{t5_splade_forward.1} parent=5 // pred_fallthru
        _
      %p719 = scmp.le.s32.totalorder 2, %s11
      // Predicated region
      $region33: #{t5_splade_forward.1} parent=5 // pred_check
        %p720 = pneg %p719
      $region34: #{t5_splade_forward.1} parent=5 // pred_check_branch
        %722 = sbr.rel (%p720) target = $region36
      $region35: #{t5_splade_forward.1} parent=5 // pred_region
        %s723 = ssub.s32 %s11, 2
        // Predicated region
        $region37: #{t5_splade_forward.1} parent=35 // pred_check
          %p724 = pneg %p87
        $region38: #{t5_splade_forward.1} parent=35 // pred_check_branch
          %726 = sbr.rel (%p724) target = $region40
        $region39: #{t5_splade_forward.1} parent=35 // pred_region
          %s727 = sand.u32 %s72, 1
          %s728 = scalar_lea.sflag [#allocation3], %s727
          %s729 = sand.u32 %s72, 1
          %s730 = smul.addr %s729, 8
          %s731 = scalar_lea.vmem [#allocation2], %s730
          %732 = dma.done %s728, 128
        $region40: #{t5_splade_forward.1} parent=35 // pred_fallthru
          _
      $region36: #{t5_splade_forward.1} parent=5 // pred_fallthru
        _
    $region6: #{t5_splade_forward.1} parent=1 // loop_footer
      %s15 = sadd.s32 1, %s11
    $region7: #{t5_splade_forward.1} parent=1 // loop_footer_branch
      %10 = sbr.rel target = $region3
    $region8: #{t5_splade_forward.1} parent=1 // loop_exit
      _
    %733 = vsyncpa [#allocation3], 1
    %s734 = scalar_lea.sflag [#allocation3], 1
    %735 = vsyncpa %s734, 1

</llo_original>
